<compile_context>
chip_gen: v7x
topology: tpu7x:2x2x1
jax: 0.10.0
libtpu: 0.0.40
codegen_flags: <defaults>
</compile_context>

<pallas_src>
import jax
import jax.numpy as jnp
from jax.experimental import pallas as pl
from jax.experimental.pallas import tpu as pltpu

LOW_T = 0.2
HIGH_T = 0.8
EPS = 1e-8

FEAT = 100            # logical feature size of the Linear layers
FEAT_PAD = 128        # lane-aligned feature size used inside the kernels
MAX_TILE = 1024       # pass-2 tile cap: fits v7x (64 MiB VMEM) and v5e/v6e
HC_RESIDENT_LIMIT = 8192   # keep full h2 resident in pass 2 up to this many padded rows


def _vmem_limit_bytes():
    """Generation-aware scoped-VMEM limit with a conservative fallback."""
    try:
        cap = pltpu.get_tpu_info().vmem_capacity_bytes
    except Exception:
        cap = 64 << 20
    return int(min(cap * 3 // 4, 100 << 20))


def _round_up(x, m):
    return ((x + m - 1) // m) * m


# ---------------------------------------------------------------------------
# Pass 1: node embeddings h2 = tanh(tanh(x W1 + b1) W2 + b2) and row norms.
# ---------------------------------------------------------------------------
def _embed_kernel(x_ref, w1_ref, b1_ref, w2_ref, b2_ref, h_ref, n_ref):
    x = x_ref[...]
    h1 = jnp.tanh(
        jnp.dot(x, w1_ref[...], preferred_element_type=jnp.float32) + b1_ref[...]
    )
    h2 = jnp.tanh(
        jnp.dot(h1, w2_ref[...], preferred_element_type=jnp.float32) + b2_ref[...]
    )
    h_ref[...] = h2
    n_ref[...] = jnp.sqrt(jnp.sum(h2 * h2, axis=-1, keepdims=True))


# ---------------------------------------------------------------------------
# Pass 2: tiled pairwise cosine thresholding fused with diagonal zeroing.
# ---------------------------------------------------------------------------
def _make_pairwise_kernel(tile, hc_resident):
    def kernel(hr_ref, hc_ref, nr_ref, nc_ref, adj_ref, out_ref):
        i = pl.program_id(0)
        j = pl.program_id(1)

        if hc_resident:
            # hc_ref holds the full (n_pad, 128) h2; take the column block.
            start = pl.multiple_of(j * tile, 128)
            hc = hc_ref[pl.ds(start, tile), :]
        else:
            hc = hc_ref[...]

        # [tile, tile] block of h2 @ h2^T via a contracted last dim
        # (no materialized transpose).
        dots = jax.lax.dot_general(
            hr_ref[...], hc,
            dimension_numbers=(((1,), (1,)), ((), ())),
            preferred_element_type=jnp.float32,
        )

        # denom = max(||h_i|| * ||h_j||, eps); compare dots against scaled
        # thresholds instead of forming cos = dots / denom (no N^2 divide).
        denom = jnp.maximum(nr_ref[...] * nc_ref[...], EPS)   # [tile, tile]
        hi = dots > HIGH_T * denom
        lo = dots < LOW_T * denom
        base = jnp.where(hi, 1.0, adj_ref[...])

        # Diagonal elements only exist on diagonal tiles (square tiles, i==j);
        # gate the iota work there so off-diagonal tiles skip it entirely.
        @pl.when(i == j)
        def _():
            row = jax.lax.broadcasted_iota(jnp.int32, (tile, tile), 0)
            col = jax.lax.broadcasted_iota(jnp.int32, (tile, tile), 1)
            out_ref[...] = jnp.where(jnp.logical_or(lo, row == col), 0.0, base)

        @pl.when(i != j)
        def _():
            out_ref[...] = jnp.where(lo, 0.0, base)

    return kernel


# ---------------------------------------------------------------------------
# Host-side wrappers.
# ---------------------------------------------------------------------------
def prepare_params(w1, b1, w2, b2):
    """One-time parameter prep: transpose PyTorch Linear weights (y = xW^T+b)
    and zero-pad to the lane-aligned feature width (exact: tanh(0)=0 and zero
    weight rows/cols do not perturb dots or norms)."""
    pad_f = FEAT_PAD - FEAT
    w1_t = jnp.pad(jnp.asarray(w1, jnp.float32).T, ((0, pad_f), (0, pad_f)))
    w2_t = jnp.pad(jnp.asarray(w2, jnp.float32).T, ((0, pad_f), (0, pad_f)))
    b1_p = jnp.pad(jnp.asarray(b1, jnp.float32), (0, pad_f)).reshape(1, FEAT_PAD)
    b2_p = jnp.pad(jnp.asarray(b2, jnp.float32), (0, pad_f)).reshape(1, FEAT_PAD)
    return w1_t, b1_p, w2_t, b2_p


def lowhigh_ws_cosine_graph_learn(semantic_x, adj, params, *,
                                  max_tile=MAX_TILE,
                                  hc_resident_limit=HC_RESIDENT_LIMIT):
    """semantic_x: [N, 100] f32, adj: [N, N] f32, params from prepare_params.

    max_tile / hc_resident_limit are exposed for testing; defaults are the
    production configuration.
    """
    w1_t, b1_p, w2_t, b2_p = params
    n, f = semantic_x.shape
    assert f == FEAT
    assert adj.shape == (n, n)

    tile = min(max_tile, _round_up(n, 128))
    num_blocks = pl.cdiv(n, tile)
    n_pad = num_blocks * tile            # only x / h2 / norms are padded (O(N*128))
    vmem_limit = _vmem_limit_bytes()

    x_p = jnp.pad(semantic_x.astype(jnp.float32),
                  ((0, n_pad - n), (0, FEAT_PAD - FEAT)))
    adj_f = adj.astype(jnp.float32)      # un-padded; aliased with the output

    # ---- Pass 1: embeddings + norms, tiled over node rows ----
    h2, norms = pl.pallas_call(
        _embed_kernel,
        out_shape=(jax.ShapeDtypeStruct((n_pad, FEAT_PAD), jnp.float32),
                   jax.ShapeDtypeStruct((n_pad, 1), jnp.float32)),
        grid=(num_blocks,),
        in_specs=[
            pl.BlockSpec((tile, FEAT_PAD), lambda i: (i, 0)),      # x rows
            pl.BlockSpec((FEAT_PAD, FEAT_PAD), lambda i: (0, 0)),  # W1^T
            pl.BlockSpec((1, FEAT_PAD), lambda i: (0, 0)),         # b1
            pl.BlockSpec((FEAT_PAD, FEAT_PAD), lambda i: (0, 0)),  # W2^T
            pl.BlockSpec((1, FEAT_PAD), lambda i: (0, 0)),         # b2
        ],
        out_specs=(pl.BlockSpec((tile, FEAT_PAD), lambda i: (i, 0)),
                   pl.BlockSpec((tile, 1), lambda i: (i, 0))),
        compiler_params=pltpu.CompilerParams(
            dimension_semantics=("parallel",),
            vmem_limit_bytes=vmem_limit),
    )(x_p, w1_t, b1_p, w2_t, b2_p)

    # Lane-major copy of norms for column broadcasting in pass 2 (O(N) data).
    norms_col = norms.reshape(1, n_pad)

    # Keep the full h2 column operand VMEM-resident when small enough
    # (accounting for default double-buffering); otherwise stream per block.
    hc_resident = (2 * n_pad * FEAT_PAD * 4) <= (8 << 20) and n_pad <= hc_resident_limit
    if hc_resident:
        hc_spec = pl.BlockSpec((n_pad, FEAT_PAD), lambda i, j: (0, 0))
    else:
        hc_spec = pl.BlockSpec((tile, FEAT_PAD), lambda i, j: (j, 0))

    # ---- Pass 2: tiled pairwise threshold / refine-adj ----
    # adj/out are un-padded: boundary blocks are ragged (OOB reads don't-care,
    # OOB writes dropped); h2/norms blocks are exact because n_pad is a
    # multiple of tile. Output aliases adj so no second N^2 buffer is needed.
    out = pl.pallas_call(
        _make_pairwise_kernel(tile, hc_resident),
        out_shape=jax.ShapeDtypeStruct((n, n), jnp.float32),
        grid=(num_blocks, num_blocks),
        in_specs=[
            pl.BlockSpec((tile, FEAT_PAD), lambda i, j: (i, 0)),   # h2 row block
            hc_spec,                                               # h2 cols
            pl.BlockSpec((tile, 1), lambda i, j: (i, 0)),          # row norms
            pl.BlockSpec((1, tile), lambda i, j: (0, j)),          # col norms
            pl.BlockSpec((tile, tile), lambda i, j: (i, j)),       # adj tile
        ],
        out_specs=pl.BlockSpec((tile, tile), lambda i, j: (i, j)),
        input_output_aliases={4: 0},
        compiler_params=pltpu.CompilerParams(
            dimension_semantics=("parallel", "parallel"),
            vmem_limit_bytes=vmem_limit),
    )(h2, h2, norms, norms_col, adj_f)

    return out


# ---------------------------------------------------------------------------
# Pure-JAX reference (matches the PyTorch module).
# ---------------------------------------------------------------------------
def _reference(semantic_x, adj, w1, b1, w2, b2):
    h = jnp.tanh(semantic_x @ w1.T + b1)
    h = jnp.tanh(h @ w2.T + b2)
    dots = h @ h.T
    norms = jnp.sqrt(jnp.sum(h * h, axis=-1, keepdims=True))
    cos = dots / jnp.maximum(norms * norms.T, EPS)
    a1 = jnp.where(cos > HIGH_T, jnp.ones_like(adj), adj)
    a2 = jnp.where(cos < LOW_T, jnp.zeros_like(adj), a1)
    return a2 - jnp.diag(jnp.diag(a2)), cos


def _check(out, x, adj, w1, b1, w2, b2, *, strict):
    ref, cos = _reference(x, adj, w1, b1, w2, b2)
    assert out.shape == ref.shape
    if strict:
        assert jnp.allclose(out, ref, atol=1e-5, rtol=1e-5), "mismatch vs reference"
        return
    # Threshold op: ignore entries whose reference cosine is within 1e-3 of a
    # cutoff (matmul rounding differences can legitimately flip those selects).
    safe = (jnp.abs(cos - HIGH_T) > 1e-3) & (jnp.abs(cos - LOW_T) > 1e-3)
    assert float(jnp.mean(safe.astype(jnp.float32))) > 0.9, "check too vacuous"
    assert bool(jnp.all(jnp.where(safe, jnp.abs(out - ref), 0.0) <= 1e-5)), \
        "mismatch vs reference (away from thresholds)"
    assert bool(jnp.all(jnp.diag(out) == 0.0)), "diagonal not zeroed"


if __name__ == "__main__":
    key = jax.random.PRNGKey(0)
    (k_x1, k_adj1, k_x2, k_adj2,
     k_w1, k_b1, k_w2, k_b2) = jax.random.split(key, 8)

    # Deterministic Linear(100, 100) parameters (uniform, PyTorch-like scale).
    bound = 1.0 / (FEAT ** 0.5)
    w1 = jax.random.uniform(k_w1, (FEAT, FEAT), minval=-bound, maxval=bound)
    b1 = jax.random.uniform(k_b1, (FEAT,), minval=-bound, maxval=bound)
    w2 = jax.random.uniform(k_w2, (FEAT, FEAT), minval=-bound, maxval=bound)
    b2 = jax.random.uniform(k_b2, (FEAT,), minval=-bound, maxval=bound)
    params = prepare_params(w1, b1, w2, b2)  # one-time weight prep

    # Case 1: small graph (default config; single ragged block, resident h2,
    # diagonal-tile path).
    n1 = 8
    x1 = jax.random.normal(k_x1, (n1, FEAT), dtype=jnp.float32)
    adj1 = (jax.random.uniform(k_adj1, (n1, n1)) > 0.5).astype(jnp.float32)
    out1 = jax.block_until_ready(lowhigh_ws_cosine_graph_learn(x1, adj1, params))
    _check(out1, x1, adj1, w1, b1, w2, b2, strict=True)

    # Cases 2/3: small tile override (testing only) to exercise the multi-block
    # grid, ragged boundary blocks, off-diagonal tiles, the adj<->out aliasing,
    # and both the resident and streamed h2-column paths.
    n2 = 200
    x2 = jax.random.normal(k_x2, (n2, FEAT), dtype=jnp.float32)
    adj2 = (jax.random.uniform(k_adj2, (n2, n2)) > 0.5).astype(jnp.float32)

    out2 = jax.block_until_ready(
        lowhigh_ws_cosine_graph_learn(x2, adj2, params, max_tile=128))
    _check(out2, x2, adj2, w1, b1, w2, b2, strict=False)

    out3 = jax.block_until_ready(
        lowhigh_ws_cosine_graph_learn(x2, adj2, params, max_tile=128,
                                      hc_resident_limit=0))
    _check(out3, x2, adj2, w1, b1, w2, b2, strict=False)

    print("KERNEL_OK")
</pallas_src>

<mosaic_0001>
module attributes {stable_mosaic.version = 11 : i64} {
  func.func @_embed_kernel(%arg0: i32, %arg1: memref<128x128xf32, #tpu.memory_space<vmem>>, %arg2: memref<128x128xf32, #tpu.memory_space<vmem>>, %arg3: memref<1x128xf32, #tpu.memory_space<vmem>>, %arg4: memref<128x128xf32, #tpu.memory_space<vmem>>, %arg5: memref<1x128xf32, #tpu.memory_space<vmem>>, %arg6: memref<128x128xf32, #tpu.memory_space<vmem>>, %arg7: memref<128x1xf32, #tpu.memory_space<vmem>>) attributes {dimension_semantics = [#tpu.dimension_semantics<parallel>], iteration_bounds = array<i64: 1>, scalar_prefetch = 0 : i64, scratch_operands = 0 : i64, tpu.core_type = #tpu.core_type<tc>, window_params = [{transform_indices = @transform_0, window_bounds = array<i64: 128, 128>}, {pipeline_mode = #tpu.pipeline_mode<synchronous>, transform_indices = @transform_1, window_bounds = array<i64: 128, 128>}, {pipeline_mode = #tpu.pipeline_mode<synchronous>, transform_indices = @transform_2, window_bounds = array<i64: 1, 128>}, {pipeline_mode = #tpu.pipeline_mode<synchronous>, transform_indices = @transform_3, window_bounds = array<i64: 128, 128>}, {pipeline_mode = #tpu.pipeline_mode<synchronous>, transform_indices = @transform_4, window_bounds = array<i64: 1, 128>}, {transform_indices = @transform_5, window_bounds = array<i64: 128, 128>}, {transform_indices = @transform_6, window_bounds = array<i64: 128, 1>}]} {
    %c0 = arith.constant 0 : index
    %c0_0 = arith.constant 0 : index
    %0 = vector.load %arg1[%c0, %c0_0] : memref<128x128xf32, #tpu.memory_space<vmem>>, vector<128x128xf32>
    %c0_1 = arith.constant 0 : index
    %c0_2 = arith.constant 0 : index
    %1 = vector.load %arg2[%c0_1, %c0_2] : memref<128x128xf32, #tpu.memory_space<vmem>>, vector<128x128xf32>
    %cst = arith.constant dense<0.000000e+00> : vector<128x128xf32>
    %2 = tpu.matmul %0, %1, %cst {dimension_numbers = #tpu.dot_dimension_numbers<[1], [0], [0], [1], [0, 0, 1, 1], [], []>} : vector<128x128xf32>, vector<128x128xf32>, vector<128x128xf32> -> vector<128x128xf32>
    %c0_3 = arith.constant 0 : index
    %c0_4 = arith.constant 0 : index
    %3 = vector.load %arg3[%c0_3, %c0_4] : memref<1x128xf32, #tpu.memory_space<vmem>>, vector<1x128xf32>
    %4 = vector.broadcast %3 : vector<1x128xf32> to vector<128x128xf32>
    %5 = arith.addf %2, %4 : vector<128x128xf32>
    %6 = math.tanh %5 : vector<128x128xf32>
    %c0_5 = arith.constant 0 : index
    %c0_6 = arith.constant 0 : index
    %7 = vector.load %arg4[%c0_5, %c0_6] : memref<128x128xf32, #tpu.memory_space<vmem>>, vector<128x128xf32>
    %cst_7 = arith.constant dense<0.000000e+00> : vector<128x128xf32>
    %8 = tpu.matmul %6, %7, %cst_7 {dimension_numbers = #tpu.dot_dimension_numbers<[1], [0], [0], [1], [0, 0, 1, 1], [], []>} : vector<128x128xf32>, vector<128x128xf32>, vector<128x128xf32> -> vector<128x128xf32>
    %c0_8 = arith.constant 0 : index
    %c0_9 = arith.constant 0 : index
    %9 = vector.load %arg5[%c0_8, %c0_9] : memref<1x128xf32, #tpu.memory_space<vmem>>, vector<1x128xf32>
    %10 = vector.broadcast %9 : vector<1x128xf32> to vector<128x128xf32>
    %11 = arith.addf %8, %10 : vector<128x128xf32>
    %12 = math.tanh %11 : vector<128x128xf32>
    %c0_10 = arith.constant 0 : index
    %c0_11 = arith.constant 0 : index
    %13 = vector.load %arg6[%c0_10, %c0_11] : memref<128x128xf32, #tpu.memory_space<vmem>>, vector<128x128xf32>
    tpu.vector_store %arg6[%c0_10, %c0_11], %12 {strides = array<i32>} : memref<128x128xf32, #tpu.memory_space<vmem>>, vector<128x128xf32>,
    %14 = arith.mulf %12, %12 : vector<128x128xf32>
    %cst_12 = arith.constant dense<0.000000e+00> : vector<128xf32>
    %15 = vector.multi_reduction <add>, %14, %cst_12 [1] : vector<128x128xf32> to vector<128xf32>
    %16 = vector.shape_cast %15 : vector<128xf32> to vector<128x1xf32>
    %17 = math.sqrt %16 : vector<128x1xf32>
    %c0_13 = arith.constant 0 : index
    %c0_14 = arith.constant 0 : index
    %18 = vector.load %arg7[%c0_13, %c0_14] : memref<128x1xf32, #tpu.memory_space<vmem>>, vector<128x1xf32>
    tpu.vector_store %arg7[%c0_13, %c0_14], %17 {strides = array<i32>} : memref<128x1xf32, #tpu.memory_space<vmem>>, vector<128x1xf32>,
    return
  }
  func.func @transform_0(%arg0: i32) -> (i32, i32) {
    %c0_i32 = arith.constant 0 : i32
    %c0_i32_0 = arith.constant 0 : i32
    return %arg0, %c0_i32 : i32, i32
  }
  func.func @transform_1(%arg0: i32) -> (i32, i32) {
    %c0_i32 = arith.constant 0 : i32
    %c0_i32_0 = arith.constant 0 : i32
    %c0_i32_1 = arith.constant 0 : i32
    return %c0_i32, %c0_i32_0 : i32, i32
  }
  func.func @transform_2(%arg0: i32) -> (i32, i32) {
    %c0_i32 = arith.constant 0 : i32
    %c0_i32_0 = arith.constant 0 : i32
    %c0_i32_1 = arith.constant 0 : i32
    return %c0_i32, %c0_i32_0 : i32, i32
  }
  func.func @transform_3(%arg0: i32) -> (i32, i32) {
    %c0_i32 = arith.constant 0 : i32
    %c0_i32_0 = arith.constant 0 : i32
    %c0_i32_1 = arith.constant 0 : i32
    return %c0_i32, %c0_i32_0 : i32, i32
  }
  func.func @transform_4(%arg0: i32) -> (i32, i32) {
    %c0_i32 = arith.constant 0 : i32
    %c0_i32_0 = arith.constant 0 : i32
    %c0_i32_1 = arith.constant 0 : i32
    return %c0_i32, %c0_i32_0 : i32, i32
  }
  func.func @transform_5(%arg0: i32) -> (i32, i32) {
    %c0_i32 = arith.constant 0 : i32
    %c0_i32_0 = arith.constant 0 : i32
    return %arg0, %c0_i32 : i32, i32
  }
  func.func @transform_6(%arg0: i32) -> (i32, i32) {
    %c0_i32 = arith.constant 0 : i32
    %c0_i32_0 = arith.constant 0 : i32
    return %arg0, %c0_i32 : i32, i32
  }
}

</mosaic_0001>

<llo_original>
// kernel: tpu_custom_call.1
$region0: #{tpu_custom_call.1}
  #allocation0 [shape = 'u32[]', space=smem, size = 0x4, offset = 0x4, fixed_abs, tag = 'smem constant byte address 0x4 - core index']
  #allocation1 [shape = 'u32[144,128]{1,0:T(1,128)}', space=vmem, size = 0x12000, scoped, tag = 'internal scratch']
  %s0 = inlined_call_operand.hbm [shape: f32[128,128], index: 0, kind: input, shape index: {}]
  %s1 = inlined_call_operand.hbm [shape: f32[128,128], index: 1, kind: input, shape index: {}]
  %s2 = inlined_call_operand.vmem [shape: f32[1,128], index: 2, kind: input, shape index: {}]
  %s3 = inlined_call_operand.hbm [shape: f32[128,128], index: 3, kind: input, shape index: {}]
  %s4 = inlined_call_operand.vmem [shape: f32[1,128], index: 4, kind: input, shape index: {}]
  %s5 = inlined_call_operand.hbm [shape: f32[128,128], index: 5, kind: output, shape index: {0}]
  %s6 = inlined_call_operand.vmem [shape: f32[128,1], index: 6, kind: output, shape index: {1}]
  %7 = xla_tuple %s5, %s6
  %s8 = sld [smem:[#allocation0]]
  $region50: #{tpu_custom_call.1} parent=0
    _
  %s10 = ssub.s32 1, %s8
  %s11 = scalar_select 0, %s10, %s8
  $region1: #{tpu_custom_call.1} parent=0
    #allocation2 [shape = 'u8[65536]{0}', space=vmem, size = 0x10000, scoped, tag = 'input window, operand 0, single buffered']
    #allocation3 [shape = 's32[1]{0}', space=sflag, size = 0x4, scoped, tag = 'scoped memory for tpu_custom_call.1']
    #allocation4 [shape = 's32[1]{0}', space=sflag, size = 0x4, scoped, tag = 'scoped memory for tpu_custom_call.1']
    #allocation5 [shape = 'u8[65536]{0}', space=vmem, size = 0x10000, scoped, tag = 'input window, operand 1, single buffered']
    #allocation6 [shape = 's32[1]{0}', space=sflag, size = 0x4, scoped, tag = 'scoped memory for tpu_custom_call.1']
    #allocation7 [shape = 'u8[65536]{0}', space=vmem, size = 0x10000, scoped, tag = 'input window, operand 3, single buffered']
    #allocation8 [shape = 'u8[65536]{0}', space=vmem, size = 0x10000, scoped, tag = 'output window, operand 0, single buffered']
    %12 = vsyncpa [#allocation3], 0
    %13 = vsyncpa [#allocation6], 0
    %14 = vsyncpa [#allocation4], 0
    // Predicated region
    $region2: #{tpu_custom_call.1} parent=1 // pred_check
      _
    $region3: #{tpu_custom_call.1} parent=1 // pred_check_branch
      %16 = sbr.rel (0) target = $region5
    $region4: #{tpu_custom_call.1} parent=1 // pred_region
      %s18 = ssub.s32 2048, 2048
      %19 = vsyncadd [#allocation3], %s18
      %s20 = sshll.u32 [#allocation2], 4
      %s21 = int_to_ptr.vmem [resolvable:$true] %s20
      %26 = dma.hbm_to_vmem [thread:$0]  %s0, 2048, %s21, [#allocation3], 128, 128, 8
    $region5: #{tpu_custom_call.1} parent=1 // pred_fallthru
      _
    // Predicated region
    $region6: #{tpu_custom_call.1} parent=1 // pred_check
      _
    $region7: #{tpu_custom_call.1} parent=1 // pred_check_branch
      %28 = sbr.rel (0) target = $region9
    $region8: #{tpu_custom_call.1} parent=1 // pred_region
      %s30 = ssub.s32 2048, 2048
      %31 = vsyncadd [#allocation6], %s30
      %s32 = sshll.u32 [#allocation5], 4
      %s33 = int_to_ptr.vmem [resolvable:$true] %s32
      %38 = dma.hbm_to_vmem [thread:$0]  %s1, 2048, %s33, [#allocation6], 128, 128, 8
    $region9: #{tpu_custom_call.1} parent=1 // pred_fallthru
      _
    // Predicated region
    $region10: #{tpu_custom_call.1} parent=1 // pred_check
      _
    $region11: #{tpu_custom_call.1} parent=1 // pred_check_branch
      %40 = sbr.rel (0) target = $region13
    $region12: #{tpu_custom_call.1} parent=1 // pred_region
      _
    $region13: #{tpu_custom_call.1} parent=1 // pred_fallthru
      _
    // Predicated region
    $region14: #{tpu_custom_call.1} parent=1 // pred_check
      _
    $region15: #{tpu_custom_call.1} parent=1 // pred_check_branch
      %42 = sbr.rel (0) target = $region17
    $region16: #{tpu_custom_call.1} parent=1 // pred_region
      %s44 = ssub.s32 2048, 2048
      %45 = vsyncadd [#allocation6], %s44
      %s46 = sshll.u32 [#allocation7], 4
      %s47 = int_to_ptr.vmem [resolvable:$true] %s46
      %52 = dma.hbm_to_vmem [thread:$0]  %s3, 2048, %s47, [#allocation6], 128, 128, 8
    $region17: #{tpu_custom_call.1} parent=1 // pred_fallthru
      _
    // Predicated region
    $region18: #{tpu_custom_call.1} parent=1 // pred_check
      _
    $region19: #{tpu_custom_call.1} parent=1 // pred_check_branch
      %54 = sbr.rel (0) target = $region21
    $region20: #{tpu_custom_call.1} parent=1 // pred_region
      _
    $region21: #{tpu_custom_call.1} parent=1 // pred_fallthru
      _
    // Predicated region
    $region22: #{tpu_custom_call.1} parent=1 // pred_check
      _
    $region23: #{tpu_custom_call.1} parent=1 // pred_check_branch
      %56 = sbr.rel (0) target = $region25
    $region24: #{tpu_custom_call.1} parent=1 // pred_region
      %57 = dma.done [#allocation3], 2048
    $region25: #{tpu_custom_call.1} parent=1 // pred_fallthru
      _
    // Predicated region
    $region26: #{tpu_custom_call.1} parent=1 // pred_check
      _
    $region27: #{tpu_custom_call.1} parent=1 // pred_check_branch
      %59 = sbr.rel (0) target = $region29
    $region28: #{tpu_custom_call.1} parent=1 // pred_region
      %60 = dma.done [#allocation6], 2048
    $region29: #{tpu_custom_call.1} parent=1 // pred_fallthru
      _
    // Predicated region
    $region30: #{tpu_custom_call.1} parent=1 // pred_check
      _
    $region31: #{tpu_custom_call.1} parent=1 // pred_check_branch
      %62 = sbr.rel (0) target = $region33
    $region32: #{tpu_custom_call.1} parent=1 // pred_region
      %63 = dma.done [#allocation6], 2048
    $region33: #{tpu_custom_call.1} parent=1 // pred_fallthru
      _
    %v64 = vld [vmem:[#allocation2] sm:$0xff]
    %v65 = vld [vmem:[#allocation2 + $0x8] sm:$0xff]
    %v66 = vld [vmem:[#allocation2 + $0x10] sm:$0xff]
    %v67 = vld [vmem:[#allocation2 + $0x18] sm:$0xff]
    %v68 = vld [vmem:[#allocation2 + $0x20] sm:$0xff]
    %v69 = vld [vmem:[#allocation2 + $0x28] sm:$0xff]
    %v70 = vld [vmem:[#allocation2 + $0x30] sm:$0xff]
    %v71 = vld [vmem:[#allocation2 + $0x38] sm:$0xff]
    %v72 = vld [vmem:[#allocation2 + $0x40] sm:$0xff]
    %v73 = vld [vmem:[#allocation2 + $0x48] sm:$0xff]
    %v74 = vld [vmem:[#allocation2 + $0x50] sm:$0xff]
    %v75 = vld [vmem:[#allocation2 + $0x58] sm:$0xff]
    %v76 = vld [vmem:[#allocation2 + $0x60] sm:$0xff]
    %v77 = vld [vmem:[#allocation2 + $0x68] sm:$0xff]
    %v78 = vld [vmem:[#allocation2 + $0x70] sm:$0xff]
    %v79 = vld [vmem:[#allocation2 + $0x78] sm:$0xff]
    %v80 = vld [vmem:[#allocation5] sm:$0xff]
    %v81 = vld [vmem:[#allocation5 + $0x8] sm:$0xff]
    %v82 = vld [vmem:[#allocation5 + $0x10] sm:$0xff]
    %v83 = vld [vmem:[#allocation5 + $0x18] sm:$0xff]
    %v84 = vld [vmem:[#allocation5 + $0x20] sm:$0xff]
    %v85 = vld [vmem:[#allocation5 + $0x28] sm:$0xff]
    %v86 = vld [vmem:[#allocation5 + $0x30] sm:$0xff]
    %v87 = vld [vmem:[#allocation5 + $0x38] sm:$0xff]
    %v88 = vld [vmem:[#allocation5 + $0x40] sm:$0xff]
    %v89 = vld [vmem:[#allocation5 + $0x48] sm:$0xff]
    %v90 = vld [vmem:[#allocation5 + $0x50] sm:$0xff]
    %v91 = vld [vmem:[#allocation5 + $0x58] sm:$0xff]
    %v92 = vld [vmem:[#allocation5 + $0x60] sm:$0xff]
    %v93 = vld [vmem:[#allocation5 + $0x68] sm:$0xff]
    %v94 = vld [vmem:[#allocation5 + $0x70] sm:$0xff]
    %v95 = vld [vmem:[#allocation5 + $0x78] sm:$0xff]
    %v96 = vld [vmem:[%s2] sm:$0x1]
    %v98 = vlaneseq
    %v99 = vshrl.u32 %v98, 7
    %v100 = vsub.s32 0, %v99
    %v101 = vrot.slane %v96, %v100
    %103 = vmatprep.subr.mxu0 0.0
    %104 = vmatpush1.msra.mxu0 %v80
    %105 = vmatprep.subr.mxu0 0.0
    %106 = vmatpush1.msra.mxu0 %v81
    %107 = vmatprep.subr.mxu0 0.0
    %108 = vmatpush1.msra.mxu0 %v82
    %109 = vmatprep.subr.mxu0 0.0
    %110 = vmatpush1.msra.mxu0 %v83
    %111 = vmatprep.subr.mxu0 0.0
    %112 = vmatpush1.msra.mxu0 %v84
    %113 = vmatprep.subr.mxu0 0.0
    %114 = vmatpush1.msra.mxu0 %v85
    %115 = vmatprep.subr.mxu0 0.0
    %116 = vmatpush1.msra.mxu0 %v86
    %117 = vmatprep.subr.mxu0 0.0
    %118 = vmatpush1.msra.mxu0 %v87
    %119 = vmatprep.subr.mxu0 0.0
    %120 = vmatpush1.msra.mxu0 %v88
    %121 = vmatprep.subr.mxu0 0.0
    %122 = vmatpush1.msra.mxu0 %v89
    %123 = vmatprep.subr.mxu0 0.0
    %124 = vmatpush1.msra.mxu0 %v90
    %125 = vmatprep.subr.mxu0 0.0
    %126 = vmatpush1.msra.mxu0 %v91
    %127 = vmatprep.subr.mxu0 0.0
    %128 = vmatpush1.msra.mxu0 %v92
    %129 = vmatprep.subr.mxu0 0.0
    %130 = vmatpush1.msra.mxu0 %v93
    %131 = vmatprep.subr.mxu0 0.0
    %132 = vmatpush1.msra.mxu0 %v94
    %133 = vmatprep.subr.mxu0 0.0
    %134 = vmatpush1.msra.mxu0 %v95
    %135 = vmatprep.subr.mxu0 0.0
    %136 = vmatpush1.msra.mxu0 0.0
    %137 = vmatprep.subr.mxu0 0.0
    %138 = vmatpush1.msra.mxu0 0.0
    %139 = vmatprep.subr.mxu0 0.0
    %140 = vmatpush1.msra.mxu0 0.0
    %141 = vmatprep.subr.mxu0 0.0
    %142 = vmatpush1.msra.mxu0 0.0
    %143 = vmatprep.subr.mxu0 0.0
    %144 = vmatpush1.msra.mxu0 0.0
    %145 = vmatprep.subr.mxu0 0.0
    %146 = vmatpush1.msra.mxu0 0.0
    %147 = vmatprep.subr.mxu0 0.0
    %148 = vmatpush1.msra.mxu0 0.0
    %149 = vmatprep.subr.mxu0 0.0
    %150 = vmatpush1.msra.mxu0 0.0
    %151 = vmatprep.subr.mxu0 0.0
    %152 = vmatpush1.msra.mxu0 0.0
    %153 = vmatprep.subr.mxu0 0.0
    %154 = vmatpush1.msra.mxu0 0.0
    %155 = vmatprep.subr.mxu0 0.0
    %156 = vmatpush1.msra.mxu0 0.0
    %157 = vmatprep.subr.mxu0 0.0
    %158 = vmatpush1.msra.mxu0 0.0
    %159 = vmatprep.subr.mxu0 0.0
    %160 = vmatpush1.msra.mxu0 0.0
    %161 = vmatprep.subr.mxu0 0.0
    %162 = vmatpush1.msra.mxu0 0.0
    %163 = vmatprep.subr.mxu0 0.0
    %164 = vmatpush1.msra.mxu0 0.0
    %165 = vmatprep.subr.mxu0 0.0
    %166 = vmatpush1.msra.mxu0 0.0
    %167 = vmatprep.mubr.f32.mxu0 0.0
    %168 = vmatmul.mubr.f32.gmra.mrb[0].mxu0 %v64
    %v169 = vpop.f32.mrb[0].mxu0
    %v170 = vadd.f32 %v101, %v169
    %v171 = vpop.f32.mrb[0].mxu0
    %172 = vmatprep.mubr.f32.mxu0 0.0
    %173 = vmatmul.mubr.f32.gmra.mrb[0].mxu0 %v65
    %v174 = vpop.f32.mrb[0].mxu0
    %v175 = vadd.f32 %v101, %v174
    %v176 = vpop.f32.mrb[0].mxu0
    %177 = vmatprep.mubr.f32.mxu0 0.0
    %178 = vmatmul.mubr.f32.gmra.mrb[0].mxu0 %v66
    %v179 = vpop.f32.mrb[0].mxu0
    %v180 = vadd.f32 %v101, %v179
    %v181 = vpop.f32.mrb[0].mxu0
    %182 = vmatprep.mubr.f32.mxu0 0.0
    %183 = vmatmul.mubr.f32.gmra.mrb[0].mxu0 %v67
    %v184 = vpop.f32.mrb[0].mxu0
    %v185 = vadd.f32 %v101, %v184
    %v186 = vpop.f32.mrb[0].mxu0
    %187 = vmatprep.mubr.f32.mxu0 0.0
    %188 = vmatmul.mubr.f32.gmra.mrb[0].mxu0 %v68
    %v189 = vpop.f32.mrb[0].mxu0
    %v190 = vadd.f32 %v101, %v189
    %v191 = vpop.f32.mrb[0].mxu0
    %192 = vmatprep.mubr.f32.mxu0 0.0
    %193 = vmatmul.mubr.f32.gmra.mrb[0].mxu0 %v69
    %v194 = vpop.f32.mrb[0].mxu0
    %v195 = vadd.f32 %v101, %v194
    %v196 = vpop.f32.mrb[0].mxu0
    %197 = vmatprep.mubr.f32.mxu0 0.0
    %198 = vmatmul.mubr.f32.gmra.mrb[0].mxu0 %v70
    %v199 = vpop.f32.mrb[0].mxu0
    %v200 = vadd.f32 %v101, %v199
    %v201 = vpop.f32.mrb[0].mxu0
    %202 = vmatprep.mubr.f32.mxu0 0.0
    %203 = vmatmul.mubr.f32.gmra.mrb[0].mxu0 %v71
    %v204 = vpop.f32.mrb[0].mxu0
    %v205 = vadd.f32 %v101, %v204
    %v206 = vpop.f32.mrb[0].mxu0
    %207 = vmatprep.mubr.f32.mxu0 0.0
    %208 = vmatmul.mubr.f32.gmra.mrb[0].mxu0 %v72
    %v209 = vpop.f32.mrb[0].mxu0
    %v210 = vadd.f32 %v101, %v209
    %v211 = vpop.f32.mrb[0].mxu0
    %212 = vmatprep.mubr.f32.mxu0 0.0
    %213 = vmatmul.mubr.f32.gmra.mrb[0].mxu0 %v73
    %v214 = vpop.f32.mrb[0].mxu0
    %v215 = vadd.f32 %v101, %v214
    %v216 = vpop.f32.mrb[0].mxu0
    %217 = vmatprep.mubr.f32.mxu0 0.0
    %218 = vmatmul.mubr.f32.gmra.mrb[0].mxu0 %v74
    %v219 = vpop.f32.mrb[0].mxu0
    %v220 = vadd.f32 %v101, %v219
    %v221 = vpop.f32.mrb[0].mxu0
    %222 = vmatprep.mubr.f32.mxu0 0.0
    %223 = vmatmul.mubr.f32.gmra.mrb[0].mxu0 %v75
    %v224 = vpop.f32.mrb[0].mxu0
    %v225 = vadd.f32 %v101, %v224
    %v226 = vpop.f32.mrb[0].mxu0
    %227 = vmatprep.mubr.f32.mxu0 0.0
    %228 = vmatmul.mubr.f32.gmra.mrb[0].mxu0 %v76
    %v229 = vpop.f32.mrb[0].mxu0
    %v230 = vadd.f32 %v101, %v229
    %v231 = vpop.f32.mrb[0].mxu0
    %232 = vmatprep.mubr.f32.mxu0 0.0
    %233 = vmatmul.mubr.f32.gmra.mrb[0].mxu0 %v77
    %v234 = vpop.f32.mrb[0].mxu0
    %v235 = vadd.f32 %v101, %v234
    %v236 = vpop.f32.mrb[0].mxu0
    %237 = vmatprep.mubr.f32.mxu0 0.0
    %238 = vmatmul.mubr.f32.gmra.mrb[0].mxu0 %v78
    %v239 = vpop.f32.mrb[0].mxu0
    %v240 = vadd.f32 %v101, %v239
    %v241 = vpop.f32.mrb[0].mxu0
    %242 = vmatprep.mubr.f32.mxu0 0.0
    %243 = vmatmul.mubr.f32.gmra.mrb[0].mxu0 %v79
    %v244 = vpop.f32.mrb[0].mxu0
    %v245 = vadd.f32 %v101, %v244
    %v246 = vpop.f32.mrb[0].mxu0
    %247 = vdwg.mxu0
    %v248 = vtanh.pop %v170
    %v249 = vtanh.pop %v175
    %v250 = vtanh.pop %v180
    %v251 = vtanh.pop %v185
    %v252 = vtanh.pop %v190
    %v253 = vtanh.pop %v195
    %v254 = vtanh.pop %v200
    %v255 = vtanh.pop %v205
    %v256 = vtanh.pop %v210
    %v257 = vtanh.pop %v215
    %v258 = vtanh.pop %v220
    %v259 = vtanh.pop %v225
    %v260 = vtanh.pop %v230
    %v261 = vtanh.pop %v235
    %v262 = vtanh.pop %v240
    %v263 = vtanh.pop %v245
    %v264 = vld [vmem:[#allocation7] sm:$0xff]
    %v265 = vld [vmem:[#allocation7 + $0x8] sm:$0xff]
    %v266 = vld [vmem:[#allocation7 + $0x10] sm:$0xff]
    %v267 = vld [vmem:[#allocation7 + $0x18] sm:$0xff]
    %v268 = vld [vmem:[#allocation7 + $0x20] sm:$0xff]
    %v269 = vld [vmem:[#allocation7 + $0x28] sm:$0xff]
    %v270 = vld [vmem:[#allocation7 + $0x30] sm:$0xff]
    %v271 = vld [vmem:[#allocation7 + $0x38] sm:$0xff]
    %v272 = vld [vmem:[#allocation7 + $0x40] sm:$0xff]
    %v273 = vld [vmem:[#allocation7 + $0x48] sm:$0xff]
    %v274 = vld [vmem:[#allocation7 + $0x50] sm:$0xff]
    %v275 = vld [vmem:[#allocation7 + $0x58] sm:$0xff]
    %v276 = vld [vmem:[#allocation7 + $0x60] sm:$0xff]
    %v277 = vld [vmem:[#allocation7 + $0x68] sm:$0xff]
    %v278 = vld [vmem:[#allocation7 + $0x70] sm:$0xff]
    %v279 = vld [vmem:[#allocation7 + $0x78] sm:$0xff]
    %v280 = vld [vmem:[%s4] sm:$0x1]
    %v282 = vlaneseq
    %v283 = vshrl.u32 %v282, 7
    %v284 = vsub.s32 0, %v283
    %v285 = vrot.slane %v280, %v284
    %287 = vmatprep.subr.mxu0 0.0
    %288 = vmatpush1.msra.mxu0 %v264
    %289 = vmatprep.subr.mxu0 0.0
    %290 = vmatpush1.msra.mxu0 %v265
    %291 = vmatprep.subr.mxu0 0.0
    %292 = vmatpush1.msra.mxu0 %v266
    %293 = vmatprep.subr.mxu0 0.0
    %294 = vmatpush1.msra.mxu0 %v267
    %295 = vmatprep.subr.mxu0 0.0
    %296 = vmatpush1.msra.mxu0 %v268
    %297 = vmatprep.subr.mxu0 0.0
    %298 = vmatpush1.msra.mxu0 %v269
    %299 = vmatprep.subr.mxu0 0.0
    %300 = vmatpush1.msra.mxu0 %v270
    %301 = vmatprep.subr.mxu0 0.0
    %302 = vmatpush1.msra.mxu0 %v271
    %303 = vmatprep.subr.mxu0 0.0
    %304 = vmatpush1.msra.mxu0 %v272
    %305 = vmatprep.subr.mxu0 0.0
    %306 = vmatpush1.msra.mxu0 %v273
    %307 = vmatprep.subr.mxu0 0.0
    %308 = vmatpush1.msra.mxu0 %v274
    %309 = vmatprep.subr.mxu0 0.0
    %310 = vmatpush1.msra.mxu0 %v275
    %311 = vmatprep.subr.mxu0 0.0
    %312 = vmatpush1.msra.mxu0 %v276
    %313 = vmatprep.subr.mxu0 0.0
    %314 = vmatpush1.msra.mxu0 %v277
    %315 = vmatprep.subr.mxu0 0.0
    %316 = vmatpush1.msra.mxu0 %v278
    %317 = vmatprep.subr.mxu0 0.0
    %318 = vmatpush1.msra.mxu0 %v279
    %319 = vmatprep.subr.mxu0 0.0
    %320 = vmatpush1.msra.mxu0 0.0
    %321 = vmatprep.subr.mxu0 0.0
    %322 = vmatpush1.msra.mxu0 0.0
    %323 = vmatprep.subr.mxu0 0.0
    %324 = vmatpush1.msra.mxu0 0.0
    %325 = vmatprep.subr.mxu0 0.0
    %326 = vmatpush1.msra.mxu0 0.0
    %327 = vmatprep.subr.mxu0 0.0
    %328 = vmatpush1.msra.mxu0 0.0
    %329 = vmatprep.subr.mxu0 0.0
    %330 = vmatpush1.msra.mxu0 0.0
    %331 = vmatprep.subr.mxu0 0.0
    %332 = vmatpush1.msra.mxu0 0.0
    %333 = vmatprep.subr.mxu0 0.0
    %334 = vmatpush1.msra.mxu0 0.0
    %335 = vmatprep.subr.mxu0 0.0
    %336 = vmatpush1.msra.mxu0 0.0
    %337 = vmatprep.subr.mxu0 0.0
    %338 = vmatpush1.msra.mxu0 0.0
    %339 = vmatprep.subr.mxu0 0.0
    %340 = vmatpush1.msra.mxu0 0.0
    %341 = vmatprep.subr.mxu0 0.0
    %342 = vmatpush1.msra.mxu0 0.0
    %343 = vmatprep.subr.mxu0 0.0
    %344 = vmatpush1.msra.mxu0 0.0
    %345 = vmatprep.subr.mxu0 0.0
    %346 = vmatpush1.msra.mxu0 0.0
    %347 = vmatprep.subr.mxu0 0.0
    %348 = vmatpush1.msra.mxu0 0.0
    %349 = vmatprep.subr.mxu0 0.0
    %350 = vmatpush1.msra.mxu0 0.0
    %351 = vmatprep.mubr.f32.mxu0 0.0
    %352 = vmatmul.mubr.f32.gmra.mrb[0].mxu0 %v248
    %v353 = vpop.f32.mrb[0].mxu0
    %v354 = vadd.f32 %v285, %v353
    %v355 = vpop.f32.mrb[0].mxu0
    %356 = vmatprep.mubr.f32.mxu0 0.0
    %357 = vmatmul.mubr.f32.gmra.mrb[0].mxu0 %v249
    %v358 = vpop.f32.mrb[0].mxu0
    %v359 = vadd.f32 %v285, %v358
    %v360 = vpop.f32.mrb[0].mxu0
    %361 = vmatprep.mubr.f32.mxu0 0.0
    %362 = vmatmul.mubr.f32.gmra.mrb[0].mxu0 %v250
    %v363 = vpop.f32.mrb[0].mxu0
    %v364 = vadd.f32 %v285, %v363
    %v365 = vpop.f32.mrb[0].mxu0
    %366 = vmatprep.mubr.f32.mxu0 0.0
    %367 = vmatmul.mubr.f32.gmra.mrb[0].mxu0 %v251
    %v368 = vpop.f32.mrb[0].mxu0
    %v369 = vadd.f32 %v285, %v368
    %v370 = vpop.f32.mrb[0].mxu0
    %371 = vmatprep.mubr.f32.mxu0 0.0
    %372 = vmatmul.mubr.f32.gmra.mrb[0].mxu0 %v252
    %v373 = vpop.f32.mrb[0].mxu0
    %v374 = vadd.f32 %v285, %v373
    %v375 = vpop.f32.mrb[0].mxu0
    %376 = vmatprep.mubr.f32.mxu0 0.0
    %377 = vmatmul.mubr.f32.gmra.mrb[0].mxu0 %v253
    %v378 = vpop.f32.mrb[0].mxu0
    %v379 = vadd.f32 %v285, %v378
    %v380 = vpop.f32.mrb[0].mxu0
    %381 = vmatprep.mubr.f32.mxu0 0.0
    %382 = vmatmul.mubr.f32.gmra.mrb[0].mxu0 %v254
    %v383 = vpop.f32.mrb[0].mxu0
    %v384 = vadd.f32 %v285, %v383
    %v385 = vpop.f32.mrb[0].mxu0
    %386 = vmatprep.mubr.f32.mxu0 0.0
    %387 = vmatmul.mubr.f32.gmra.mrb[0].mxu0 %v255
    %v388 = vpop.f32.mrb[0].mxu0
    %v389 = vadd.f32 %v285, %v388
    %v390 = vpop.f32.mrb[0].mxu0
    %391 = vmatprep.mubr.f32.mxu0 0.0
    %392 = vmatmul.mubr.f32.gmra.mrb[0].mxu0 %v256
    %v393 = vpop.f32.mrb[0].mxu0
    %v394 = vadd.f32 %v285, %v393
    %v395 = vpop.f32.mrb[0].mxu0
    %396 = vmatprep.mubr.f32.mxu0 0.0
    %397 = vmatmul.mubr.f32.gmra.mrb[0].mxu0 %v257
    %v398 = vpop.f32.mrb[0].mxu0
    %v399 = vadd.f32 %v285, %v398
    %v400 = vpop.f32.mrb[0].mxu0
    %401 = vmatprep.mubr.f32.mxu0 0.0
    %402 = vmatmul.mubr.f32.gmra.mrb[0].mxu0 %v258
    %v403 = vpop.f32.mrb[0].mxu0
    %v404 = vadd.f32 %v285, %v403
    %v405 = vpop.f32.mrb[0].mxu0
    %406 = vmatprep.mubr.f32.mxu0 0.0
    %407 = vmatmul.mubr.f32.gmra.mrb[0].mxu0 %v259
    %v408 = vpop.f32.mrb[0].mxu0
    %v409 = vadd.f32 %v285, %v408
    %v410 = vpop.f32.mrb[0].mxu0
    %411 = vmatprep.mubr.f32.mxu0 0.0
    %412 = vmatmul.mubr.f32.gmra.mrb[0].mxu0 %v260
    %v413 = vpop.f32.mrb[0].mxu0
    %v414 = vadd.f32 %v285, %v413
    %v415 = vpop.f32.mrb[0].mxu0
    %416 = vmatprep.mubr.f32.mxu0 0.0
    %417 = vmatmul.mubr.f32.gmra.mrb[0].mxu0 %v261
    %v418 = vpop.f32.mrb[0].mxu0
    %v419 = vadd.f32 %v285, %v418
    %v420 = vpop.f32.mrb[0].mxu0
    %421 = vmatprep.mubr.f32.mxu0 0.0
    %422 = vmatmul.mubr.f32.gmra.mrb[0].mxu0 %v262
    %v423 = vpop.f32.mrb[0].mxu0
    %v424 = vadd.f32 %v285, %v423
    %v425 = vpop.f32.mrb[0].mxu0
    %426 = vmatprep.mubr.f32.mxu0 0.0
    %427 = vmatmul.mubr.f32.gmra.mrb[0].mxu0 %v263
    %v428 = vpop.f32.mrb[0].mxu0
    %v429 = vadd.f32 %v285, %v428
    %v430 = vpop.f32.mrb[0].mxu0
    %431 = vdwg.mxu0
    %v432 = vtanh.pop %v354
    %v433 = vtanh.pop %v359
    %v434 = vtanh.pop %v364
    %v435 = vtanh.pop %v369
    %v436 = vtanh.pop %v374
    %v437 = vtanh.pop %v379
    %v438 = vtanh.pop %v384
    %v439 = vtanh.pop %v389
    %v440 = vtanh.pop %v394
    %v441 = vtanh.pop %v399
    %v442 = vtanh.pop %v404
    %v443 = vtanh.pop %v409
    %v444 = vtanh.pop %v414
    %v445 = vtanh.pop %v419
    %v446 = vtanh.pop %v424
    %v447 = vtanh.pop %v429
    %448 = vst [vmem:[#allocation8] sm:$0xff] %v432
    %449 = vst [vmem:[#allocation8 + $0x8] sm:$0xff] %v433
    %450 = vst [vmem:[#allocation8 + $0x10] sm:$0xff] %v434
    %451 = vst [vmem:[#allocation8 + $0x18] sm:$0xff] %v435
    %452 = vst [vmem:[#allocation8 + $0x20] sm:$0xff] %v436
    %453 = vst [vmem:[#allocation8 + $0x28] sm:$0xff] %v437
    %454 = vst [vmem:[#allocation8 + $0x30] sm:$0xff] %v438
    %455 = vst [vmem:[#allocation8 + $0x38] sm:$0xff] %v439
    %456 = vst [vmem:[#allocation8 + $0x40] sm:$0xff] %v440
    %457 = vst [vmem:[#allocation8 + $0x48] sm:$0xff] %v441
    %458 = vst [vmem:[#allocation8 + $0x50] sm:$0xff] %v442
    %459 = vst [vmem:[#allocation8 + $0x58] sm:$0xff] %v443
    %460 = vst [vmem:[#allocation8 + $0x60] sm:$0xff] %v444
    %461 = vst [vmem:[#allocation8 + $0x68] sm:$0xff] %v445
    %462 = vst [vmem:[#allocation8 + $0x70] sm:$0xff] %v446
    %463 = vst [vmem:[#allocation8 + $0x78] sm:$0xff] %v447
    %v464 = vmul.f32 %v432, %v432
    %v465 = vmul.f32 %v433, %v433
    %v466 = vmul.f32 %v434, %v434
    %v467 = vmul.f32 %v435, %v435
    %v468 = vmul.f32 %v436, %v436
    %v469 = vmul.f32 %v437, %v437
    %v470 = vmul.f32 %v438, %v438
    %v471 = vmul.f32 %v439, %v439
    %v472 = vmul.f32 %v440, %v440
    %v473 = vmul.f32 %v441, %v441
    %v474 = vmul.f32 %v442, %v442
    %v475 = vmul.f32 %v443, %v443
    %v476 = vmul.f32 %v444, %v444
    %v477 = vmul.f32 %v445, %v445
    %v478 = vmul.f32 %v446, %v446
    %v479 = vmul.f32 %v447, %v447
    %480 = vadd.xlane.f32.xlu0 %v464
    %v481 = vpop.xlane.xlu0 %480
    %482 = vadd.xlane.f32.xlu0 %v465
    %v483 = vpop.xlane.xlu0 %482
    %484 = vadd.xlane.f32.xlu0 %v466
    %v485 = vpop.xlane.xlu0 %484
    %486 = vadd.xlane.f32.xlu0 %v467
    %v487 = vpop.xlane.xlu0 %486
    %488 = vadd.xlane.f32.xlu0 %v468
    %v489 = vpop.xlane.xlu0 %488
    %490 = vadd.xlane.f32.xlu0 %v469
    %v491 = vpop.xlane.xlu0 %490
    %492 = vadd.xlane.f32.xlu0 %v470
    %v493 = vpop.xlane.xlu0 %492
    %494 = vadd.xlane.f32.xlu0 %v471
    %v495 = vpop.xlane.xlu0 %494
    %496 = vadd.xlane.f32.xlu0 %v472
    %v497 = vpop.xlane.xlu0 %496
    %498 = vadd.xlane.f32.xlu0 %v473
    %v499 = vpop.xlane.xlu0 %498
    %500 = vadd.xlane.f32.xlu0 %v474
    %v501 = vpop.xlane.xlu0 %500
    %502 = vadd.xlane.f32.xlu0 %v475
    %v503 = vpop.xlane.xlu0 %502
    %504 = vadd.xlane.f32.xlu0 %v476
    %v505 = vpop.xlane.xlu0 %504
    %506 = vadd.xlane.f32.xlu0 %v477
    %v507 = vpop.xlane.xlu0 %506
    %508 = vadd.xlane.f32.xlu0 %v478
    %v509 = vpop.xlane.xlu0 %508
    %510 = vadd.xlane.f32.xlu0 %v479
    %v511 = vpop.xlane.xlu0 %510
    %v512 = vrsqrt.pop %v481
    %v513 = vmul.f32 %v481, %v512
    %vm514 = vcmp.eq.f32.partialorder %v481, inf
    %v515 = vsel %vm514, %v481, %v513
    %vm516 = vcmp.eq.f32.partialorder %v481, 0.0
    %v517 = vand.u32 %v481, 2147483648
    %v518 = vsel %vm516, %v517, %v515
    %v519 = vrsqrt.pop %v483
    %v520 = vmul.f32 %v483, %v519
    %vm521 = vcmp.eq.f32.partialorder %v483, inf
    %v522 = vsel %vm521, %v483, %v520
    %vm523 = vcmp.eq.f32.partialorder %v483, 0.0
    %v524 = vand.u32 %v483, 2147483648
    %v525 = vsel %vm523, %v524, %v522
    %v526 = vrsqrt.pop %v485
    %v527 = vmul.f32 %v485, %v526
    %vm528 = vcmp.eq.f32.partialorder %v485, inf
    %v529 = vsel %vm528, %v485, %v527
    %vm530 = vcmp.eq.f32.partialorder %v485, 0.0
    %v531 = vand.u32 %v485, 2147483648
    %v532 = vsel %vm530, %v531, %v529
    %v533 = vrsqrt.pop %v487
    %v534 = vmul.f32 %v487, %v533
    %vm535 = vcmp.eq.f32.partialorder %v487, inf
    %v536 = vsel %vm535, %v487, %v534
    %vm537 = vcmp.eq.f32.partialorder %v487, 0.0
    %v538 = vand.u32 %v487, 2147483648
    %v539 = vsel %vm537, %v538, %v536
    %v540 = vrsqrt.pop %v489
    %v541 = vmul.f32 %v489, %v540
    %vm542 = vcmp.eq.f32.partialorder %v489, inf
    %v543 = vsel %vm542, %v489, %v541
    %vm544 = vcmp.eq.f32.partialorder %v489, 0.0
    %v545 = vand.u32 %v489, 2147483648
    %v546 = vsel %vm544, %v545, %v543
    %v547 = vrsqrt.pop %v491
    %v548 = vmul.f32 %v491, %v547
    %vm549 = vcmp.eq.f32.partialorder %v491, inf
    %v550 = vsel %vm549, %v491, %v548
    %vm551 = vcmp.eq.f32.partialorder %v491, 0.0
    %v552 = vand.u32 %v491, 2147483648
    %v553 = vsel %vm551, %v552, %v550
    %v554 = vrsqrt.pop %v493
    %v555 = vmul.f32 %v493, %v554
    %vm556 = vcmp.eq.f32.partialorder %v493, inf
    %v557 = vsel %vm556, %v493, %v555
    %vm558 = vcmp.eq.f32.partialorder %v493, 0.0
    %v559 = vand.u32 %v493, 2147483648
    %v560 = vsel %vm558, %v559, %v557
    %v561 = vrsqrt.pop %v495
    %v562 = vmul.f32 %v495, %v561
    %vm563 = vcmp.eq.f32.partialorder %v495, inf
    %v564 = vsel %vm563, %v495, %v562
    %vm565 = vcmp.eq.f32.partialorder %v495, 0.0
    %v566 = vand.u32 %v495, 2147483648
    %v567 = vsel %vm565, %v566, %v564
    %v568 = vrsqrt.pop %v497
    %v569 = vmul.f32 %v497, %v568
    %vm570 = vcmp.eq.f32.partialorder %v497, inf
    %v571 = vsel %vm570, %v497, %v569
    %vm572 = vcmp.eq.f32.partialorder %v497, 0.0
    %v573 = vand.u32 %v497, 2147483648
    %v574 = vsel %vm572, %v573, %v571
    %v575 = vrsqrt.pop %v499
    %v576 = vmul.f32 %v499, %v575
    %vm577 = vcmp.eq.f32.partialorder %v499, inf
    %v578 = vsel %vm577, %v499, %v576
    %vm579 = vcmp.eq.f32.partialorder %v499, 0.0
    %v580 = vand.u32 %v499, 2147483648
    %v581 = vsel %vm579, %v580, %v578
    %v582 = vrsqrt.pop %v501
    %v583 = vmul.f32 %v501, %v582
    %vm584 = vcmp.eq.f32.partialorder %v501, inf
    %v585 = vsel %vm584, %v501, %v583
    %vm586 = vcmp.eq.f32.partialorder %v501, 0.0
    %v587 = vand.u32 %v501, 2147483648
    %v588 = vsel %vm586, %v587, %v585
    %v589 = vrsqrt.pop %v503
    %v590 = vmul.f32 %v503, %v589
    %vm591 = vcmp.eq.f32.partialorder %v503, inf
    %v592 = vsel %vm591, %v503, %v590
    %vm593 = vcmp.eq.f32.partialorder %v503, 0.0
    %v594 = vand.u32 %v503, 2147483648
    %v595 = vsel %vm593, %v594, %v592
    %v596 = vrsqrt.pop %v505
    %v597 = vmul.f32 %v505, %v596
    %vm598 = vcmp.eq.f32.partialorder %v505, inf
    %v599 = vsel %vm598, %v505, %v597
    %vm600 = vcmp.eq.f32.partialorder %v505, 0.0
    %v601 = vand.u32 %v505, 2147483648
    %v602 = vsel %vm600, %v601, %v599
    %v603 = vrsqrt.pop %v507
    %v604 = vmul.f32 %v507, %v603
    %vm605 = vcmp.eq.f32.partialorder %v507, inf
    %v606 = vsel %vm605, %v507, %v604
    %vm607 = vcmp.eq.f32.partialorder %v507, 0.0
    %v608 = vand.u32 %v507, 2147483648
    %v609 = vsel %vm607, %v608, %v606
    %v610 = vrsqrt.pop %v509
    %v611 = vmul.f32 %v509, %v610
    %vm612 = vcmp.eq.f32.partialorder %v509, inf
    %v613 = vsel %vm612, %v509, %v611
    %vm614 = vcmp.eq.f32.partialorder %v509, 0.0
    %v615 = vand.u32 %v509, 2147483648
    %v616 = vsel %vm614, %v615, %v613
    %v617 = vrsqrt.pop %v511
    %v618 = vmul.f32 %v511, %v617
    %vm619 = vcmp.eq.f32.partialorder %v511, inf
    %v620 = vsel %vm619, %v511, %v618
    %vm621 = vcmp.eq.f32.partialorder %v511, 0.0
    %v622 = vand.u32 %v511, 2147483648
    %v623 = vsel %vm621, %v622, %v620
    %vm624 = vcmask 7168
    %625 = vst.msk [vmem:[%s6] sm:$0xff] %vm624, %v518
    %626 = vst.msk [vmem:[%s6 + $0x8] sm:$0xff] %vm624, %v525
    %627 = vst.msk [vmem:[%s6 + $0x10] sm:$0xff] %vm624, %v532
    %628 = vst.msk [vmem:[%s6 + $0x18] sm:$0xff] %vm624, %v539
    %629 = vst.msk [vmem:[%s6 + $0x20] sm:$0xff] %vm624, %v546
    %630 = vst.msk [vmem:[%s6 + $0x28] sm:$0xff] %vm624, %v553
    %631 = vst.msk [vmem:[%s6 + $0x30] sm:$0xff] %vm624, %v560
    %632 = vst.msk [vmem:[%s6 + $0x38] sm:$0xff] %vm624, %v567
    %633 = vst.msk [vmem:[%s6 + $0x40] sm:$0xff] %vm624, %v574
    %634 = vst.msk [vmem:[%s6 + $0x48] sm:$0xff] %vm624, %v581
    %635 = vst.msk [vmem:[%s6 + $0x50] sm:$0xff] %vm624, %v588
    %636 = vst.msk [vmem:[%s6 + $0x58] sm:$0xff] %vm624, %v595
    %637 = vst.msk [vmem:[%s6 + $0x60] sm:$0xff] %vm624, %v602
    %638 = vst.msk [vmem:[%s6 + $0x68] sm:$0xff] %vm624, %v609
    %639 = vst.msk [vmem:[%s6 + $0x70] sm:$0xff] %vm624, %v616
    %640 = vst.msk [vmem:[%s6 + $0x78] sm:$0xff] %vm624, %v623
    // Predicated region
    $region34: #{tpu_custom_call.1} parent=1 // pred_check
      _
    $region35: #{tpu_custom_call.1} parent=1 // pred_check_branch
      %642 = sbr.rel (0) target = $region37
    $region36: #{tpu_custom_call.1} parent=1 // pred_region
      %s644 = ssub.s32 2048, 2048
      %645 = vsyncadd [#allocation4], %s644
      %s646 = sshll.u32 [#allocation8], 4
      %s647 = int_to_ptr.vmem [resolvable:$true] %s646
      %652 = dma.vmem_to_hbm [thread:$0]  %s647, 2048, %s5, [#allocation4], 128, 128, 8
    $region37: #{tpu_custom_call.1} parent=1 // pred_fallthru
      _
    // Predicated region
    $region38: #{tpu_custom_call.1} parent=1 // pred_check
      _
    $region39: #{tpu_custom_call.1} parent=1 // pred_check_branch
      %654 = sbr.rel (0) target = $region41
    $region40: #{tpu_custom_call.1} parent=1 // pred_region
      _
    $region41: #{tpu_custom_call.1} parent=1 // pred_fallthru
      _
    // Predicated region
    $region42: #{tpu_custom_call.1} parent=1 // pred_check
      _
    $region43: #{tpu_custom_call.1} parent=1 // pred_check_branch
      %656 = sbr.rel (0) target = $region45
    $region44: #{tpu_custom_call.1} parent=1 // pred_region
      %657 = dma.done [#allocation4], 2048
    $region45: #{tpu_custom_call.1} parent=1 // pred_fallthru
      _
    // Predicated region
    $region46: #{tpu_custom_call.1} parent=1 // pred_check
      _
    $region47: #{tpu_custom_call.1} parent=1 // pred_check_branch
      %659 = sbr.rel (0) target = $region49
    $region48: #{tpu_custom_call.1} parent=1 // pred_region
      _
    $region49: #{tpu_custom_call.1} parent=1 // pred_fallthru
      _
    %660 = vsyncpa [#allocation3], 1
    %661 = vsyncpa [#allocation6], 1
    %662 = vsyncpa [#allocation4], 1

</llo_original>
